<compile_context>
chip_gen: v6e
topology: v6e:2x2x1
jax: 0.10.0
libtpu: 0.0.40
codegen_flags: <defaults>
</compile_context>

<pallas_src>
import functools
import math

import jax
import jax.numpy as jnp
from jax.experimental import pallas as pl
from jax.experimental.pallas import tpu as pltpu

LANE = 128  # vreg lane width; each fused projection is padded to this.


def head_kernel(x_ref, w_ref, bias_ref, o_ref):
    # x_ref:    (Bblk, T, C)      bf16 activations for Bblk batch elements
    # w_ref:    (C, 3*LANE)       bf16 fused [Wk | Wq*scale | Wv], zero-padded
    # bias_ref: (T, T)            f32 additive causal bias (0 / -1e30)
    # o_ref:    (Bblk, T, LANE)   output slab (lane-dense; real head in [:H])
    Bblk, T, C = x_ref.shape

    x = x_ref[...]                                   # (Bblk, T, C) bf16
    w = w_ref[...]                                   # (C, 3*LANE)  bf16

    # One MXU matmul for every batch row and all three projections.
    qkv = jnp.dot(x.reshape(Bblk * T, C), w,
                  preferred_element_type=jnp.float32)        # (Bblk*T, 3*LANE)

    # 128-lane-aligned slices -> free views.  Cast back to bf16 so the score
    # and PV matmuls issue at native bf16 MXU rate; accumulation stays f32.
    k = qkv[:, 0 * LANE:1 * LANE].astype(jnp.bfloat16).reshape(Bblk, T, LANE)
    q = qkv[:, 1 * LANE:2 * LANE].astype(jnp.bfloat16).reshape(Bblk, T, LANE)
    v = qkv[:, 2 * LANE:3 * LANE].astype(jnp.bfloat16).reshape(Bblk, T, LANE)

    # Scores: 1/sqrt(head_size) is already folded into Wq; the zero-padded
    # lanes contribute nothing to the contraction.
    wei = jnp.einsum("btd,bsd->bts", q, k,
                     preferred_element_type=jnp.float32)     # (Bblk, T, T) f32

    # Precomputed additive causal bias (single VPU add, no iota/cmp/select).
    wei = wei + bias_ref[...][None, :, :]

    # Numerically stable softmax in f32; reciprocal routed to the EUP slot.
    m = jnp.max(wei, axis=-1, keepdims=True)
    p = jnp.exp(wei - m)
    denom = jnp.sum(p, axis=-1, keepdims=True)
    p = p * pl.reciprocal(denom, approx=True)

    # Dropout: eval-mode identity.
    # TODO(synk): training-mode dropout mask not implemented.

    out = jnp.einsum("bts,bsd->btd", p.astype(jnp.bfloat16), v,
                     preferred_element_type=jnp.float32)     # (Bblk, T, LANE)
    o_ref[...] = out.astype(o_ref.dtype)


def fuse_head_weights(wk, wq, wv):
    """One-time fusion of the three (C, H) projection weights.

    Returns a (C, 3*LANE) bf16 array laid out as [Wk | Wq*1/sqrt(H) | Wv],
    each projection zero-padded to a 128-lane boundary.  Meant to be computed
    once and stored (parameter), not rebuilt per forward call.
    """
    C, H = wk.shape
    assert H <= LANE, "head_size > 128 would need a multi-tile layout"
    scale = 1.0 / math.sqrt(H)

    def pad(w):
        return jnp.pad(w, ((0, 0), (0, LANE - H)))

    w = jnp.concatenate([pad(wk), pad(wq * scale), pad(wv)], axis=1)
    return w.astype(jnp.bfloat16)


def _choose_batch_block(B):
    """Batch elements per grid step: amortize per-step overhead (target 8),
    keep >= 2 grid steps when B > 1 so v7x's two TensorCores both get work,
    and divide B evenly.  VMEM per step stays ~1 MiB * Bblk at T=256."""
    if B <= 1:
        return 1
    bblk = min(8, max(1, B // 2))
    while B % bblk:
        bblk -= 1
    return bblk


@functools.partial(jax.jit, static_argnames=("head_size",))
def head_forward(x, w_qkv, *, head_size):
    """x: (B, T, C) float; w_qkv: (C, 3*LANE) bf16 from fuse_head_weights.
    Returns (B, T, head_size) in x.dtype."""
    B, T, C = x.shape
    assert w_qkv.shape == (C, 3 * LANE)
    bblk = _choose_batch_block(B)
    grid = (B // bblk,)

    # Additive causal bias; -1e30 (finite) rather than -inf for robustness.
    causal_bias = jnp.where(
        jnp.tril(jnp.ones((T, T), dtype=bool)), 0.0, -1e30
    ).astype(jnp.float32)

    # bf16 operands into the kernel: native MXU rate on v5e/v6e/v7x and half
    # the HBM->VMEM DMA bytes for the activations.
    x_bf16 = x.astype(jnp.bfloat16)

    out_padded = pl.pallas_call(
        head_kernel,
        out_shape=jax.ShapeDtypeStruct((B, T, LANE), x.dtype),
        grid_spec=pltpu.PrefetchScalarGridSpec(
            num_scalar_prefetch=0,
            grid=grid,
            in_specs=[
                pl.BlockSpec((bblk, T, C), lambda b: (b, 0, 0)),
                # Constant index maps: fetched once, kept resident in VMEM.
                pl.BlockSpec((C, 3 * LANE), lambda b: (0, 0)),
                pl.BlockSpec((T, T), lambda b: (0, 0)),
            ],
            out_specs=pl.BlockSpec((bblk, T, LANE), lambda b: (b, 0, 0)),
        ),
        compiler_params=pltpu.CompilerParams(
            dimension_semantics=("parallel",)),
    )(x_bf16, w_qkv, causal_bias)

    # Drop the zero-padded lanes; real head output lives in the first H lanes.
    return out_padded[:, :, :head_size]


def head_reference(x, wk, wq, wv):
    """Pure-JAX f32 reference matching the PyTorch module's forward."""
    k = x @ wk
    q = x @ wq
    v = x @ wv
    scale = 1.0 / math.sqrt(wk.shape[-1])
    wei = jnp.einsum("btd,bsd->bts", q, k) * scale
    T = x.shape[1]
    mask = jnp.tril(jnp.ones((T, T), dtype=bool))
    wei = jnp.where(mask[None, :, :], wei, -jnp.inf)
    wei = jax.nn.softmax(wei, axis=-1)
    return wei @ v


if __name__ == "__main__":
    # Small shapes consistent with the module (batch, seq<=block_size,
    # n_embd, head_size).  B=4 exercises the batched (Bblk=2) grid path.
    B, T, C, H = 4, 8, 32, 16
    key = jax.random.PRNGKey(0)
    kx, kk, kq, kv = jax.random.split(key, 4)

    x = jax.random.normal(kx, (B, T, C), dtype=jnp.float32)
    bound = 1.0 / math.sqrt(C)
    wk = jax.random.uniform(kk, (C, H), jnp.float32, -bound, bound)
    wq = jax.random.uniform(kq, (C, H), jnp.float32, -bound, bound)
    wv = jax.random.uniform(kv, (C, H), jnp.float32, -bound, bound)

    # Weight fusion / padding / scaling / bf16 cast done once (stored param).
    w_qkv = fuse_head_weights(wk, wq, wv)

    out = jax.block_until_ready(head_forward(x, w_qkv, head_size=H))
    ref = head_reference(x, wk, wq, wv)

    assert out.shape == (B, T, H)
    # Tolerance reflects deliberate bf16 MXU operands (f32 accumulation) and
    # the approximate EUP reciprocal in the softmax normalization.
    assert jnp.allclose(out, ref, atol=3e-2, rtol=3e-2)
    print("KERNEL_OK")
</pallas_src>

<mosaic_0001>
module attributes {stable_mosaic.version = 11 : i64} {
  func.func @head_kernel(%arg0: i32, %arg1: memref<2x8x32xbf16, #tpu.memory_space<vmem>>, %arg2: memref<32x384xbf16, #tpu.memory_space<vmem>>, %arg3: memref<8x8xf32, #tpu.memory_space<vmem>>, %arg4: memref<2x8x128xf32, #tpu.memory_space<vmem>>) attributes {dimension_semantics = [#tpu.dimension_semantics<parallel>], iteration_bounds = array<i64: 2>, scalar_prefetch = 0 : i64, scratch_operands = 0 : i64, tpu.core_type = #tpu.core_type<tc>, window_params = [{transform_indices = @transform_0, window_bounds = array<i64: 2, 8, 32>}, {pipeline_mode = #tpu.pipeline_mode<synchronous>, transform_indices = @transform_1, window_bounds = array<i64: 32, 384>}, {pipeline_mode = #tpu.pipeline_mode<synchronous>, transform_indices = @transform_2, window_bounds = array<i64: 8, 8>}, {transform_indices = @transform_3, window_bounds = array<i64: 2, 8, 128>}]} {
    %c0 = arith.constant 0 : index
    %c0_0 = arith.constant 0 : index
    %c0_1 = arith.constant 0 : index
    %0 = vector.load %arg1[%c0, %c0_0, %c0_1] : memref<2x8x32xbf16, #tpu.memory_space<vmem>>, vector<2x8x32xbf16>
    %c0_2 = arith.constant 0 : index
    %c0_3 = arith.constant 0 : index
    %1 = vector.load %arg2[%c0_2, %c0_3] : memref<32x384xbf16, #tpu.memory_space<vmem>>, vector<32x384xbf16>
    %2 = vector.shape_cast %0 : vector<2x8x32xbf16> to vector<16x32xbf16>
    %cst = arith.constant dense<0.000000e+00> : vector<16x384xf32>
    %3 = tpu.matmul %2, %1, %cst {dimension_numbers = #tpu.dot_dimension_numbers<[1], [0], [0], [1], [0, 0, 1, 1], [], []>} : vector<16x32xbf16>, vector<32x384xbf16>, vector<16x384xf32> -> vector<16x384xf32>
    %4 = vector.extract_strided_slice %3 {offsets = [0, 0], sizes = [16, 128], strides = [1, 1]} : vector<16x384xf32> to vector<16x128xf32>
    %5 = arith.truncf %4 : vector<16x128xf32> to vector<16x128xbf16>
    %6 = vector.shape_cast %5 : vector<16x128xbf16> to vector<2x8x128xbf16>
    %7 = vector.extract_strided_slice %3 {offsets = [0, 128], sizes = [16, 128], strides = [1, 1]} : vector<16x384xf32> to vector<16x128xf32>
    %8 = arith.truncf %7 : vector<16x128xf32> to vector<16x128xbf16>
    %9 = vector.shape_cast %8 : vector<16x128xbf16> to vector<2x8x128xbf16>
    %10 = vector.extract_strided_slice %3 {offsets = [0, 256], sizes = [16, 128], strides = [1, 1]} : vector<16x384xf32> to vector<16x128xf32>
    %11 = arith.truncf %10 : vector<16x128xf32> to vector<16x128xbf16>
    %12 = vector.shape_cast %11 : vector<16x128xbf16> to vector<2x8x128xbf16>
    "tpu.trace_start"() <{level = 10 : i32, message = "btd,bsd->bts"}> : () -> ()
    %cst_4 = arith.constant dense<0.000000e+00> : vector<2x8x8xf32>
    %13 = tpu.matmul %9, %6, %cst_4 {dimension_numbers = #tpu.dot_dimension_numbers<[2], [2], [1], [1], [0, 0, 0, 1, 1, 1], [0], [0]>} : vector<2x8x128xbf16>, vector<2x8x128xbf16>, vector<2x8x8xf32> -> vector<2x8x8xf32>
    "tpu.trace_stop"() : () -> ()
    %c0_5 = arith.constant 0 : index
    %c0_6 = arith.constant 0 : index
    %14 = vector.load %arg3[%c0_5, %c0_6] : memref<8x8xf32, #tpu.memory_space<vmem>>, vector<8x8xf32>
    %15 = vector.shape_cast %14 : vector<8x8xf32> to vector<1x8x8xf32>
    %16 = vector.broadcast %15 : vector<1x8x8xf32> to vector<2x8x8xf32>
    %17 = arith.addf %13, %16 : vector<2x8x8xf32>
    %cst_7 = arith.constant dense<0xFF800000> : vector<2x8xf32>
    %18 = vector.multi_reduction <maximumf>, %17, %cst_7 [2] : vector<2x8x8xf32> to vector<2x8xf32>
    %19 = vector.shape_cast %18 : vector<2x8xf32> to vector<2x8x1xf32>
    %20 = vector.broadcast %19 : vector<2x8x1xf32> to vector<2x8x8xf32>
    %21 = arith.subf %17, %20 : vector<2x8x8xf32>
    %22 = math.exp %21 : vector<2x8x8xf32>
    %cst_8 = arith.constant dense<0.000000e+00> : vector<2x8xf32>
    %23 = vector.multi_reduction <add>, %22, %cst_8 [2] : vector<2x8x8xf32> to vector<2x8xf32>
    %24 = vector.shape_cast %23 : vector<2x8xf32> to vector<2x8x1xf32>
    %25 = tpu.reciprocal %24 {approx = true} : vector<2x8x1xf32> -> vector<2x8x1xf32>
    %26 = vector.broadcast %25 : vector<2x8x1xf32> to vector<2x8x8xf32>
    %27 = arith.mulf %22, %26 : vector<2x8x8xf32>
    %28 = arith.truncf %27 : vector<2x8x8xf32> to vector<2x8x8xbf16>
    "tpu.trace_start"() <{level = 10 : i32, message = "bts,bsd->btd"}> : () -> ()
    %cst_9 = arith.constant dense<0.000000e+00> : vector<2x8x128xf32>
    %29 = tpu.matmul %28, %12, %cst_9 {dimension_numbers = #tpu.dot_dimension_numbers<[2], [1], [1], [2], [0, 0, 0, 1, 1, 2], [0], [0]>} : vector<2x8x8xbf16>, vector<2x8x128xbf16>, vector<2x8x128xf32> -> vector<2x8x128xf32>
    "tpu.trace_stop"() : () -> ()
    %c0_10 = arith.constant 0 : index
    %c0_11 = arith.constant 0 : index
    %c0_12 = arith.constant 0 : index
    %30 = vector.load %arg4[%c0_10, %c0_11, %c0_12] : memref<2x8x128xf32, #tpu.memory_space<vmem>>, vector<2x8x128xf32>
    tpu.vector_store %arg4[%c0_10, %c0_11, %c0_12], %29 {strides = array<i32>} : memref<2x8x128xf32, #tpu.memory_space<vmem>>, vector<2x8x128xf32>,
    return
  }
  func.func @transform_0(%arg0: i32) -> (i32, i32, i32) {
    %c0_i32 = arith.constant 0 : i32
    %c0_i32_0 = arith.constant 0 : i32
    %c0_i32_1 = arith.constant 0 : i32
    return %arg0, %c0_i32, %c0_i32_0 : i32, i32, i32
  }
  func.func @transform_1(%arg0: i32) -> (i32, i32) {
    %c0_i32 = arith.constant 0 : i32
    %c0_i32_0 = arith.constant 0 : i32
    %c0_i32_1 = arith.constant 0 : i32
    return %c0_i32, %c0_i32_0 : i32, i32
  }
  func.func @transform_2(%arg0: i32) -> (i32, i32) {
    %c0_i32 = arith.constant 0 : i32
    %c0_i32_0 = arith.constant 0 : i32
    %c0_i32_1 = arith.constant 0 : i32
    return %c0_i32, %c0_i32_0 : i32, i32
  }
  func.func @transform_3(%arg0: i32) -> (i32, i32, i32) {
    %c0_i32 = arith.constant 0 : i32
    %c0_i32_0 = arith.constant 0 : i32
    %c0_i32_1 = arith.constant 0 : i32
    return %arg0, %c0_i32, %c0_i32_0 : i32, i32, i32
  }
}

</mosaic_0001>

<llo_original>
// kernel: head_forward.1
$region0: #{head_forward.1}
  #allocation0 [shape = 'u32[]', space=smem, size = 0x4, offset = 0x4, fixed_abs, tag = 'smem constant byte address 0x4 - core index']
  #allocation1 [shape = 'u32[144,128]{1,0:T(1,128)}', space=vmem, size = 0x12000, scoped, tag = 'internal scratch']
  %s0 = inlined_call_operand.vmem [shape: bf16[4,8,32], index: 0, kind: input, shape index: {}]
  %s1 = inlined_call_operand.vmem [shape: bf16[32,384], index: 1, kind: input, shape index: {}]
  %s2 = inlined_call_operand.vmem [shape: f32[8,8], index: 2, kind: input, shape index: {}]
  %s3 = inlined_call_operand.hbm [shape: f32[4,8,128], index: 3, kind: output, shape index: {}]
  %s4 = sld [smem:[#allocation0]]
  $region45: #{head_forward.1} parent=0
    _
  %s6 = ssub.s32 1, %s4
  %s7 = scalar_select 0, %s6, %s4
  $region1: #{head_forward.1} parent=0
    #allocation2 [shape = 'u8[16384]{0}', space=vmem, size = 0x4000, scoped, tag = 'output window, operand 0']
    #allocation3 [shape = 's32[2]{0}', space=sflag, size = 0x8, scoped, tag = 'scoped memory for head_forward.1']
    %8 = vsyncpa [#allocation3], 0
    %s9 = scalar_lea.sflag [#allocation3], 1
    %10 = vsyncpa %s9, 0
    loop: start=0, step=1, limit=4
    $region2: #{head_forward.1} parent=1 // loop_pre_header
      _
    $region3: #{head_forward.1} parent=1 // loop_header
      %s12 = sphi 0, %s16
      %p13 = scmp.ge.s32.totalorder %s12, 4
      %s22 = sphi 0, %s24
      %s25 = sphi 0, %s22
      %s26 = sphi 0, %s25
      %s42 = sphi 0, %s26
      %s46 = sphi 0, %s46
      %s48 = sphi 0, %s46
      %s49 = sphi 0, %s48
      %s63 = sphi 0, %s49
      %s67 = sphi 0, %s67
      %s69 = sphi 0, %s67
      %s70 = sphi 0, %s69
      %s84 = sphi 0, %s70
      %s90 = sphi 0, %s92
      %s93 = sphi 0, %s90
      %s94 = sphi 0, %s93
      %s110 = sphi 0, %s94
    $region4: #{head_forward.1} parent=1 // loop_header_branch
      %15 = sbr.rel (%p13) target = $region8
    $region5: #{head_forward.1} parent=1 // loop_body
      %s17 = ssub.s32 %s12, 1
      %s18 = ssub.s32 %s12, 2
      %s19 = sadd.s32 %s12, 1
      %s20 = ssub.s32 %s12, %s19
      %p21 = scmp.eq.s32.totalorder %s20, 0
      %s23 = sadd.s32 %s22, 1
      %s24 = scalar_select %p21, %s22, %s23
      %p27 = pneg %p21
      %p28 = scmp.eq.s32.totalorder %s12, 1
      %p29 = por %p27, %p28
      %p30 = scmp.ne.s32.totalorder %s22, %s25
      %p31 = scmp.eq.s32.totalorder %s12, 0
      %p32 = por %p30, %p31
      %p33 = scmp.ne.s32.totalorder %s22, %s25
      %p34 = scmp.eq.s32.totalorder %s17, 1
      %p35 = por %p33, %p34
      %p36 = scmp.ne.s32.totalorder %s25, %s26
      %p37 = scmp.eq.s32.totalorder %s17, 0
      %p38 = por %p36, %p37
      %p39 = scmp.ne.s32.totalorder %s25, %s26
      %p40 = scmp.eq.s32.totalorder %s18, 1
      %p41 = por %p39, %p40
      %p43 = scmp.ne.s32.totalorder %s26, %s42
      %p44 = scmp.eq.s32.totalorder %s18, 0
      %p45 = por %p43, %p44
      %s47 = sadd.s32 %s46, 1
      %p50 = scmp.eq.s32.totalorder %s12, 1
      %p51 = scmp.ne.s32.totalorder %s46, %s48
      %p52 = scmp.eq.s32.totalorder %s12, 0
      %p53 = por %p51, %p52
      %p54 = scmp.ne.s32.totalorder %s46, %s48
      %p55 = scmp.eq.s32.totalorder %s17, 1
      %p56 = por %p54, %p55
      %p57 = scmp.ne.s32.totalorder %s48, %s49
      %p58 = scmp.eq.s32.totalorder %s17, 0
      %p59 = por %p57, %p58
      %p60 = scmp.ne.s32.totalorder %s48, %s49
      %p61 = scmp.eq.s32.totalorder %s18, 1
      %p62 = por %p60, %p61
      %p64 = scmp.ne.s32.totalorder %s49, %s63
      %p65 = scmp.eq.s32.totalorder %s18, 0
      %p66 = por %p64, %p65
      %s68 = sadd.s32 %s67, 1
      %p71 = scmp.eq.s32.totalorder %s12, 1
      %p72 = scmp.ne.s32.totalorder %s67, %s69
      %p73 = scmp.eq.s32.totalorder %s12, 0
      %p74 = por %p72, %p73
      %p75 = scmp.ne.s32.totalorder %s67, %s69
      %p76 = scmp.eq.s32.totalorder %s17, 1
      %p77 = por %p75, %p76
      %p78 = scmp.ne.s32.totalorder %s69, %s70
      %p79 = scmp.eq.s32.totalorder %s17, 0
      %p80 = por %p78, %p79
      %p81 = scmp.ne.s32.totalorder %s69, %s70
      %p82 = scmp.eq.s32.totalorder %s18, 1
      %p83 = por %p81, %p82
      %p85 = scmp.ne.s32.totalorder %s70, %s84
      %p86 = scmp.eq.s32.totalorder %s18, 0
      %p87 = por %p85, %p86
      %s88 = ssub.s32 %s12, %s19
      %p89 = scmp.eq.s32.totalorder %s88, 0
      %s91 = sadd.s32 %s90, 1
      %s92 = scalar_select %p89, %s90, %s91
      %p95 = pneg %p89
      %p96 = scmp.eq.s32.totalorder %s12, 1
      %p97 = por %p95, %p96
      %p98 = scmp.ne.s32.totalorder %s90, %s93
      %p99 = scmp.eq.s32.totalorder %s12, 0
      %p100 = por %p98, %p99
      %p101 = scmp.ne.s32.totalorder %s90, %s93
      %p102 = scmp.eq.s32.totalorder %s17, 1
      %p103 = por %p101, %p102
      %p104 = scmp.ne.s32.totalorder %s93, %s94
      %p105 = scmp.eq.s32.totalorder %s17, 0
      %p106 = por %p104, %p105
      %p107 = scmp.ne.s32.totalorder %s93, %s94
      %p108 = scmp.eq.s32.totalorder %s18, 1
      %p109 = por %p107, %p108
      %p111 = scmp.ne.s32.totalorder %s94, %s110
      %p112 = scmp.eq.s32.totalorder %s18, 0
      %p113 = por %p111, %p112
      %p114 = scmp.le.s32.totalorder 1, %s12
      %p115 = scmp.lt.s32.totalorder %s12, 3
      %p116 = pnand %p114, %p115
      %p117 = pneg %p116
      // Predicated region
      $region9: #{head_forward.1} parent=5 // pred_check
        _
      $region10: #{head_forward.1} parent=5 // pred_check_branch
        %119 = sbr.rel (%p116) target = $region12
      $region11: #{head_forward.1} parent=5 // pred_region
        %s120 = ssub.s32 %s12, 1
        // Predicated region
        $region13: #{head_forward.1} parent=11 // pred_check
          %p121 = pneg %p59
        $region14: #{head_forward.1} parent=11 // pred_check_branch
          %123 = sbr.rel (%p121) target = $region16
        $region15: #{head_forward.1} parent=11 // pred_region
          _
        $region16: #{head_forward.1} parent=11 // pred_fallthru
          _
        // Predicated region
        $region17: #{head_forward.1} parent=11 // pred_check
          %p124 = pneg %p80
        $region18: #{head_forward.1} parent=11 // pred_check_branch
          %126 = sbr.rel (%p124) target = $region20
        $region19: #{head_forward.1} parent=11 // pred_region
          _
        $region20: #{head_forward.1} parent=11 // pred_fallthru
          _
      $region12: #{head_forward.1} parent=5 // pred_fallthru
        _
      %p127 = scmp.lt.s32.totalorder %s12, 2
      // Predicated region
      $region21: #{head_forward.1} parent=5 // pred_check
        %p128 = pneg %p127
      $region22: #{head_forward.1} parent=5 // pred_check_branch
        %130 = sbr.rel (%p128) target = $region24
      $region23: #{head_forward.1} parent=5 // pred_region
        // Predicated region
        $region25: #{head_forward.1} parent=23 // pred_check
          %p131 = pneg %p32
        $region26: #{head_forward.1} parent=23 // pred_check_branch
          %133 = sbr.rel (%p131) target = $region28
        $region27: #{head_forward.1} parent=23 // pred_region
          %s134 = smul.u32 2, %s12
          %p135 = scmp.lt.s32.totalorder %s134, 3
          %s136 = scalar_select %p135, %s134, 3
          %s137 = smul.addr %s136, 4
          %s138 = scalar_lea.vmem %s0, %s137
          %s139 = smul.u32 2, %s12
        $region28: #{head_forward.1} parent=23 // pred_fallthru
          _
      $region24: #{head_forward.1} parent=5 // pred_fallthru
        _
      %p140 = scmp.le.s32.totalorder 1, %s12
      %p141 = scmp.lt.s32.totalorder %s12, 3
      %p142 = pnand %p140, %p141
      %p143 = pneg %p142
      // Predicated region
      $region29: #{head_forward.1} parent=5 // pred_check
        _
      $region30: #{head_forward.1} parent=5 // pred_check_branch
        %145 = sbr.rel (%p142) target = $region32
      $region31: #{head_forward.1} parent=5 // pred_region
        %s146 = ssub.s32 %s12, 1
        %s147 = smul.u32 2, %s17
        %p148 = scmp.lt.s32.totalorder %s147, 3
        %s149 = scalar_select %p148, %s147, 3
        %s150 = smul.addr %s149, 4
        %s151 = scalar_lea.vmem %s0, %s150
        %p152 = pneg %p38
        %p153 = pneg %p35
        %p154 = pneg %p59
        %p155 = pneg %p56
        %p156 = pneg %p80
        %p157 = pneg %p77
        %p158 = pneg %p106
        %p159 = pneg %p103
        %s160 = sand.u32 %s93, 1
        %s161 = scalar_lea.sflag [#allocation3], %s160
        %s162 = sand.u32 %s93, 1
        %s163 = smul.addr %s162, 16
        %s164 = scalar_lea.vmem [#allocation2], %s163
        %s165 = smul.u32 2, %s17
        %p166 = scmp.lt.s32.totalorder %s165, 3
        %s167 = scalar_select %p166, %s165, 3
        %s168 = smul.addr %s167, 4
        %s169 = scalar_lea.vmem %s0, %s168
        %s170 = smul.u32 2, %s17
        %s171 = smul.u32 2, %s17
        %v173 = vld [vmem:[%s169] sm:$0xf]
        %v174 = vld [vmem:[%s169 + $0x4] sm:$0xf]
        %v175 = vld [vmem:[%s1] sm:$0xff]
        %v176 = vld [vmem:[%s1 + $0x8] sm:$0xf]
        %v177 = vld [vmem:[%s1 + $0xc] sm:$0xff]
        %v178 = vld [vmem:[%s1 + $0x14] sm:$0xf]
        %v179 = vld [vmem:[%s1 + $0x18] sm:$0xff]
        %v180 = vld [vmem:[%s1 + $0x20] sm:$0xf]
        %v181 = vld [vmem:[%s1 + $0x24] sm:$0xff]
        %v182 = vld [vmem:[%s1 + $0x2c] sm:$0xf]
        %v185 = vunpack.c.l.b16 %v173
        %v186 = vunpack.c.l.b16 %v174
        %v187 = vpack.c.b16 %v186, %v185
        %v196 = vunpack.c.l.b16 %v175
        %v197 = vunpack.c.h.b16 %v175
        %v198 = vunpack.c.l.b16 %v176
        %v199 = vunpack.c.l.b16 %v177
        %v200 = vunpack.c.h.b16 %v177
        %v201 = vunpack.c.l.b16 %v178
        %v202 = vunpack.c.l.b16 %v179
        %v203 = vunpack.c.h.b16 %v179
        %v204 = vunpack.c.l.b16 %v180
        %v205 = vunpack.c.l.b16 %v181
        %v206 = vunpack.c.h.b16 %v181
        %v207 = vunpack.c.l.b16 %v182
        %v208 = vpack.c.b16 %v199, %v196
        %v209 = vpack.c.b16 %v200, %v197
        %v210 = vpack.c.b16 %v201, %v198
        %v211 = vpack.c.b16 %v205, %v202
        %v212 = vpack.c.b16 %v206, %v203
        %v213 = vpack.c.b16 %v207, %v204
        %vm220 = vcmask 261120
        %v222 = vsel %vm220, %v187, 0
        %224 = vmatprep.subr.bf16.mxu0 0
        %225 = vmatpush1.bf16.msra.mxu0 0
        %226 = vmatprep.subr.bf16.mxu0 0
        %227 = vmatpush1.bf16.msra.mxu0 0
        %228 = vmatprep.subr.bf16.mxu0 0
        %229 = vmatpush1.bf16.msra.mxu0 0
        %230 = vmatprep.subr.bf16.mxu0 0
        %231 = vmatpush1.bf16.msra.mxu0 0
        %232 = vmatprep.subr.bf16.mxu0 0
        %233 = vmatpush1.bf16.msra.mxu0 0
        %234 = vmatprep.subr.bf16.mxu0 0
        %235 = vmatpush1.bf16.msra.mxu0 0
        %236 = vmatprep.subr.bf16.mxu0 %v212
        %237 = vmatpush1.bf16.msra.mxu0 %v211
        %238 = vmatprep.subr.bf16.mxu0 %v209
        %239 = vmatpush1.bf16.msra.mxu0 %v208
        %240 = vmatprep.subr.bf16.mxu0 0
        %241 = vmatpush2.bf16.msra.mxu0 0
        %242 = vmatprep.subr.bf16.mxu0 0
        %243 = vmatpush2.bf16.msra.mxu0 0
        %244 = vmatprep.subr.bf16.mxu0 0
        %245 = vmatpush2.bf16.msra.mxu0 0
        %246 = vmatprep.subr.bf16.mxu0 0
        %247 = vmatpush2.bf16.msra.mxu0 0
        %248 = vmatprep.subr.bf16.mxu0 0
        %249 = vmatpush2.bf16.msra.mxu0 0
        %250 = vmatprep.subr.bf16.mxu0 0
        %251 = vmatpush2.bf16.msra.mxu0 0
        %252 = vmatprep.subr.bf16.mxu0 0
        %253 = vmatpush2.bf16.msra.mxu0 0
        %254 = vmatprep.subr.bf16.mxu0 0
        %255 = vmatpush2.bf16.msra.mxu0 0
        %256 = vmatprep.mubr.bf16.mxu0 0
        %257 = vmatmul.mubr.bf16.gmra.mxu0 %v222
        %v258 = vpop.f32.mrf.mxu0
        %v259 = vadd.f32 0.0, %v258
        %v260 = vpop.f32.mrf.mxu0
        %v261 = vadd.f32 0.0, %v260
        %v262 = vpop.f32.mrf.mxu0
        %v263 = vadd.f32 0.0, %v262
        %v264 = vpop.f32.mrf.mxu0
        %v265 = vadd.f32 0.0, %v264
        %266 = vdwg.mxu0
        %267 = vmatprep.subr.bf16.mxu0 0
        %268 = vmatpush1.bf16.msra.mxu0 0
        %269 = vmatprep.subr.bf16.mxu0 0
        %270 = vmatpush1.bf16.msra.mxu0 0
        %271 = vmatprep.subr.bf16.mxu0 0
        %272 = vmatpush1.bf16.msra.mxu0 0
        %273 = vmatprep.subr.bf16.mxu0 0
        %274 = vmatpush1.bf16.msra.mxu0 0
        %275 = vmatprep.subr.bf16.mxu0 0
        %276 = vmatpush1.bf16.msra.mxu0 0
        %277 = vmatprep.subr.bf16.mxu0 0
        %278 = vmatpush1.bf16.msra.mxu0 0
        %279 = vmatprep.subr.bf16.mxu0 0
        %280 = vmatpush1.bf16.msra.mxu0 %v213
        %281 = vmatprep.subr.bf16.mxu0 0
        %282 = vmatpush1.bf16.msra.mxu0 %v210
        %283 = vmatprep.subr.bf16.mxu0 0
        %284 = vmatpush2.bf16.msra.mxu0 0
        %285 = vmatprep.subr.bf16.mxu0 0
        %286 = vmatpush2.bf16.msra.mxu0 0
        %287 = vmatprep.subr.bf16.mxu0 0
        %288 = vmatpush2.bf16.msra.mxu0 0
        %289 = vmatprep.subr.bf16.mxu0 0
        %290 = vmatpush2.bf16.msra.mxu0 0
        %291 = vmatprep.subr.bf16.mxu0 0
        %292 = vmatpush2.bf16.msra.mxu0 0
        %293 = vmatprep.subr.bf16.mxu0 0
        %294 = vmatpush2.bf16.msra.mxu0 0
        %295 = vmatprep.subr.bf16.mxu0 0
        %296 = vmatpush2.bf16.msra.mxu0 0
        %297 = vmatprep.subr.bf16.mxu0 0
        %298 = vmatpush2.bf16.msra.mxu0 0
        %299 = vmatprep.mubr.bf16.mxu0 0
        %300 = vmatmul.mubr.bf16.gmra.mxu0 %v222
        %v301 = vpop.f32.mrf.mxu0
        %v302 = vadd.f32 0.0, %v301
        %v303 = vpop.f32.mrf.mxu0
        %v304 = vpop.f32.mrf.mxu0
        %v305 = vadd.f32 0.0, %v304
        %v306 = vpop.f32.mrf.mxu0
        %307 = vdwg.mxu0
        %v308 = vpack.c.bf16 %v263, %v259
        %v310 = vunpack.c.l.b16 %v308
        %v311 = vunpack.c.h.b16 %v308
        %v312 = vpack.c.b16 %v310, %v310
        %v313 = vpack.c.b16 %v311, %v311
        %v316 = vpack.c.bf16 %v265, %v261
        %v318 = vunpack.c.l.b16 %v316
        %v319 = vunpack.c.h.b16 %v316
        %v320 = vpack.c.b16 %v318, %v318
        %v321 = vpack.c.b16 %v319, %v319
        %v324 = vpack.c.bf16 %v305, %v302
        %v326 = vunpack.c.l.b16 %v324
        %v327 = vunpack.c.h.b16 %v324
        %v328 = vpack.c.b16 %v326, %v326
        %v329 = vpack.c.b16 %v327, %v327
        %v330 = vld [vmem:[%s2] sm:$0xff]
        %331 = vmatprep.subr.bf16.mxu0 0
        %332 = vmatpush1.bf16.xpose.msra.mxu0 0
        %333 = vmatprep.subr.bf16.mxu0 0
        %334 = vmatpush1.bf16.xpose.msra.mxu0 0
        %335 = vmatprep.subr.bf16.mxu0 0
        %336 = vmatpush1.bf16.xpose.msra.mxu0 0
        %337 = vmatprep.subr.bf16.mxu0 0
        %338 = vmatpush1.bf16.xpose.msra.mxu0 0
        %339 = vmatprep.subr.bf16.mxu0 0
        %340 = vmatpush1.bf16.xpose.msra.mxu0 0
        %341 = vmatprep.subr.bf16.mxu0 0
        %342 = vmatpush1.bf16.xpose.msra.mxu0 0
        %343 = vmatprep.subr.bf16.mxu0 0
        %344 = vmatpush1.bf16.xpose.msra.mxu0 0
        %345 = vmatprep.subr.bf16.mxu0 0
        %346 = vmatpush1.bf16.xpose.msra.mxu0 %v312
        %347 = vmatprep.subr.bf16.mxu0 0
        %348 = vmatpush2.bf16.xpose.msra.mxu0 0
        %349 = vmatprep.subr.bf16.mxu0 0
        %350 = vmatpush2.bf16.xpose.msra.mxu0 0
        %351 = vmatprep.subr.bf16.mxu0 0
        %352 = vmatpush2.bf16.xpose.msra.mxu0 0
        %353 = vmatprep.subr.bf16.mxu0 0
        %354 = vmatpush2.bf16.xpose.msra.mxu0 0
        %355 = vmatprep.subr.bf16.mxu0 0
        %356 = vmatpush2.bf16.xpose.msra.mxu0 0
        %357 = vmatprep.subr.bf16.mxu0 0
        %358 = vmatpush2.bf16.xpose.msra.mxu0 0
        %359 = vmatprep.subr.bf16.mxu0 0
        %360 = vmatpush2.bf16.xpose.msra.mxu0 0
        %361 = vmatprep.subr.bf16.mxu0 0
        %362 = vmatpush2.bf16.xpose.msra.mxu0 0
        %363 = vmatprep.mubr.bf16.mxu0 0
        %364 = vmatmul.mubr.bf16.gmra.mxu0 %v320
        %v365 = vpop.f32.mrf.mxu0
        %v366 = vadd.f32 %v330, %v365
        %v367 = vpop.f32.mrf.mxu0
        %v368 = vpop.f32.mrf.mxu0
        %v369 = vpop.f32.mrf.mxu0
        %370 = vdwg.mxu0
        %371 = vmatprep.subr.bf16.mxu0 0
        %372 = vmatpush1.bf16.xpose.msra.mxu0 0
        %373 = vmatprep.subr.bf16.mxu0 0
        %374 = vmatpush1.bf16.xpose.msra.mxu0 0
        %375 = vmatprep.subr.bf16.mxu0 0
        %376 = vmatpush1.bf16.xpose.msra.mxu0 0
        %377 = vmatprep.subr.bf16.mxu0 0
        %378 = vmatpush1.bf16.xpose.msra.mxu0 0
        %379 = vmatprep.subr.bf16.mxu0 0
        %380 = vmatpush1.bf16.xpose.msra.mxu0 0
        %381 = vmatprep.subr.bf16.mxu0 0
        %382 = vmatpush1.bf16.xpose.msra.mxu0 0
        %383 = vmatprep.subr.bf16.mxu0 0
        %384 = vmatpush1.bf16.xpose.msra.mxu0 0
        %385 = vmatprep.subr.bf16.mxu0 0
        %386 = vmatpush1.bf16.xpose.msra.mxu0 %v313
        %387 = vmatprep.subr.bf16.mxu0 0
        %388 = vmatpush2.bf16.xpose.msra.mxu0 0
        %389 = vmatprep.subr.bf16.mxu0 0
        %390 = vmatpush2.bf16.xpose.msra.mxu0 0
        %391 = vmatprep.subr.bf16.mxu0 0
        %392 = vmatpush2.bf16.xpose.msra.mxu0 0
        %393 = vmatprep.subr.bf16.mxu0 0
        %394 = vmatpush2.bf16.xpose.msra.mxu0 0
        %395 = vmatprep.subr.bf16.mxu0 0
        %396 = vmatpush2.bf16.xpose.msra.mxu0 0
        %397 = vmatprep.subr.bf16.mxu0 0
        %398 = vmatpush2.bf16.xpose.msra.mxu0 0
        %399 = vmatprep.subr.bf16.mxu0 0
        %400 = vmatpush2.bf16.xpose.msra.mxu0 0
        %401 = vmatprep.subr.bf16.mxu0 0
        %402 = vmatpush2.bf16.xpose.msra.mxu0 0
        %403 = vmatprep.mubr.bf16.mxu0 0
        %404 = vmatmul.mubr.bf16.gmra.mxu0 %v321
        %v405 = vpop.f32.mrf.mxu0
        %v406 = vadd.f32 %v330, %v405
        %v407 = vpop.f32.mrf.mxu0
        %v408 = vpop.f32.mrf.mxu0
        %v409 = vpop.f32.mrf.mxu0
        %410 = vdwg.mxu0
        %vm411 = vcmask 64512
        %v412 = vsel %vm411, %v366, -inf
        %413 = vmax.xlane.f32.xlu0 %v412
        %v414 = vpop.xlane.xlu0 %413
        %v415 = vsel %vm411, %v406, -inf
        %416 = vmax.xlane.f32.xlu0 %v415
        %v417 = vpop.xlane.xlu0 %416
        %v418 = vsub.f32 %v366, %v414
        %v419 = vsub.f32 %v406, %v417
        %v420 = vmul.f32 %v418, 1.442695
        %v421 = vpow.pop %v420
        %v422 = vmul.f32 %v419, 1.442695
        %v423 = vpow.pop %v422
        %v424 = vsel %vm411, %v421, 0.0
        %425 = vadd.xlane.f32.xlu0 %v424
        %v426 = vpop.xlane.xlu0 %425
        %v427 = vsel %vm411, %v423, 0.0
        %428 = vadd.xlane.f32.xlu0 %v427
        %v429 = vpop.xlane.xlu0 %428
        %v430 = vrcp.pop %v426
        %v431 = vrcp.pop %v429
        %v432 = vmul.f32 %v421, %v430
        %v433 = vmul.f32 %v423, %v431
        %v434 = vpack.c.bf16 %v432, %v432
        %v435 = vpack.c.bf16 %v433, %v433
        %v437 = vsel %vm411, %v434, 0
        %vm439 = vcmask 1043456
        %v441 = vsel %vm439, %v328, 0
        %443 = vmatprep.subr.bf16.mxu0 0
        %444 = vmatpush1.bf16.msra.mxu0 0
        %445 = vmatprep.subr.bf16.mxu0 0
        %446 = vmatpush1.bf16.msra.mxu0 0
        %447 = vmatprep.subr.bf16.mxu0 0
        %448 = vmatpush1.bf16.msra.mxu0 0
        %449 = vmatprep.subr.bf16.mxu0 0
        %450 = vmatpush1.bf16.msra.mxu0 0
        %451 = vmatprep.subr.bf16.mxu0 0
        %452 = vmatpush1.bf16.msra.mxu0 0
        %453 = vmatprep.subr.bf16.mxu0 0
        %454 = vmatpush1.bf16.msra.mxu0 0
        %455 = vmatprep.subr.bf16.mxu0 0
        %456 = vmatpush1.bf16.msra.mxu0 0
        %457 = vmatprep.subr.bf16.mxu0 0
        %458 = vmatpush1.bf16.msra.mxu0 %v441
        %459 = vmatprep.subr.bf16.mxu0 0
        %460 = vmatpush2.bf16.msra.mxu0 0
        %461 = vmatprep.subr.bf16.mxu0 0
        %462 = vmatpush2.bf16.msra.mxu0 0
        %463 = vmatprep.subr.bf16.mxu0 0
        %464 = vmatpush2.bf16.msra.mxu0 0
        %465 = vmatprep.subr.bf16.mxu0 0
        %466 = vmatpush2.bf16.msra.mxu0 0
        %467 = vmatprep.subr.bf16.mxu0 0
        %468 = vmatpush2.bf16.msra.mxu0 0
        %469 = vmatprep.subr.bf16.mxu0 0
        %470 = vmatpush2.bf16.msra.mxu0 0
        %471 = vmatprep.subr.bf16.mxu0 0
        %472 = vmatpush2.bf16.msra.mxu0 0
        %473 = vmatprep.subr.bf16.mxu0 0
        %474 = vmatpush2.bf16.msra.mxu0 0
        %475 = vmatprep.mubr.bf16.mxu0 0
        %476 = vmatmul.mubr.bf16.gmra.mxu0 %v437
        %v477 = vpop.f32.mrf.mxu0
        %v478 = vadd.f32 0.0, %v477
        %v479 = vpop.f32.mrf.mxu0
        %v480 = vpop.f32.mrf.mxu0
        %v481 = vpop.f32.mrf.mxu0
        %482 = vdwg.mxu0
        %v484 = vsel %vm411, %v435, 0
        %v487 = vsel %vm439, %v329, 0
        %489 = vmatprep.subr.bf16.mxu0 0
        %490 = vmatpush1.bf16.msra.mxu0 0
        %491 = vmatprep.subr.bf16.mxu0 0
        %492 = vmatpush1.bf16.msra.mxu0 0
        %493 = vmatprep.subr.bf16.mxu0 0
        %494 = vmatpush1.bf16.msra.mxu0 0
        %495 = vmatprep.subr.bf16.mxu0 0
        %496 = vmatpush1.bf16.msra.mxu0 0
        %497 = vmatprep.subr.bf16.mxu0 0
        %498 = vmatpush1.bf16.msra.mxu0 0
        %499 = vmatprep.subr.bf16.mxu0 0
        %500 = vmatpush1.bf16.msra.mxu0 0
        %501 = vmatprep.subr.bf16.mxu0 0
        %502 = vmatpush1.bf16.msra.mxu0 0
        %503 = vmatprep.subr.bf16.mxu0 0
        %504 = vmatpush1.bf16.msra.mxu0 %v487
        %505 = vmatprep.subr.bf16.mxu0 0
        %506 = vmatpush2.bf16.msra.mxu0 0
        %507 = vmatprep.subr.bf16.mxu0 0
        %508 = vmatpush2.bf16.msra.mxu0 0
        %509 = vmatprep.subr.bf16.mxu0 0
        %510 = vmatpush2.bf16.msra.mxu0 0
        %511 = vmatprep.subr.bf16.mxu0 0
        %512 = vmatpush2.bf16.msra.mxu0 0
        %513 = vmatprep.subr.bf16.mxu0 0
        %514 = vmatpush2.bf16.msra.mxu0 0
        %515 = vmatprep.subr.bf16.mxu0 0
        %516 = vmatpush2.bf16.msra.mxu0 0
        %517 = vmatprep.subr.bf16.mxu0 0
        %518 = vmatpush2.bf16.msra.mxu0 0
        %519 = vmatprep.subr.bf16.mxu0 0
        %520 = vmatpush2.bf16.msra.mxu0 0
        %521 = vmatprep.mubr.bf16.mxu0 0
        %522 = vmatmul.mubr.bf16.gmra.mxu0 %v484
        %v523 = vpop.f32.mrf.mxu0
        %v524 = vadd.f32 0.0, %v523
        %v525 = vpop.f32.mrf.mxu0
        %v526 = vpop.f32.mrf.mxu0
        %v527 = vpop.f32.mrf.mxu0
        %528 = vdwg.mxu0
        %529 = vst [vmem:[%s164] sm:$0xff] %v478
        %530 = vst [vmem:[%s164 + $0x8] sm:$0xff] %v524
        %s531 = sand.u32 %s93, 1
        %s532 = scalar_lea.sflag [#allocation3], %s531
        %s533 = sand.u32 %s93, 1
        %s534 = smul.addr %s533, 16
        %s535 = scalar_lea.vmem [#allocation2], %s534
        // Predicated region
        $region33: #{head_forward.1} parent=31 // pred_check
          %p536 = pneg %p103
        $region34: #{head_forward.1} parent=31 // pred_check_branch
          %538 = sbr.rel (%p536) target = $region36
        $region35: #{head_forward.1} parent=31 // pred_region
          %s539 = smul.u32 2, %s17
          %s541 = ssub.s32 256, 256
          %542 = vsyncadd %s532, %s541
          %s543 = smul.addr %s539, 128
          %s544 = scalar_lea.hbm %s3, %s543
          %s545 = sshll.u32 %s535, 4
          %s546 = int_to_ptr.vmem [resolvable:$true] %s545
          %551 = dma.vmem_to_hbm [thread:$0]  %s546, 256, %s544, %s532, 128, 128, 8
        $region36: #{head_forward.1} parent=31 // pred_fallthru
          _
      $region32: #{head_forward.1} parent=5 // pred_fallthru
        _
      %p552 = scmp.le.s32.totalorder 2, %s12
      // Predicated region
      $region37: #{head_forward.1} parent=5 // pred_check
        %p553 = pneg %p552
      $region38: #{head_forward.1} parent=5 // pred_check_branch
        %555 = sbr.rel (%p553) target = $region40
      $region39: #{head_forward.1} parent=5 // pred_region
        %s556 = ssub.s32 %s12, 2
        // Predicated region
        $region41: #{head_forward.1} parent=39 // pred_check
          %p557 = pneg %p109
        $region42: #{head_forward.1} parent=39 // pred_check_branch
          %559 = sbr.rel (%p557) target = $region44
        $region43: #{head_forward.1} parent=39 // pred_region
          %s560 = sand.u32 %s94, 1
          %s561 = scalar_lea.sflag [#allocation3], %s560
          %s562 = sand.u32 %s94, 1
          %s563 = smul.addr %s562, 16
          %s564 = scalar_lea.vmem [#allocation2], %s563
          %565 = dma.done %s561, 256
        $region44: #{head_forward.1} parent=39 // pred_fallthru
          _
      $region40: #{head_forward.1} parent=5 // pred_fallthru
        _
    $region6: #{head_forward.1} parent=1 // loop_footer
      %s16 = sadd.s32 1, %s12
    $region7: #{head_forward.1} parent=1 // loop_footer_branch
      %11 = sbr.rel target = $region3
    $region8: #{head_forward.1} parent=1 // loop_exit
      _
    %566 = vsyncpa [#allocation3], 1
    %s567 = scalar_lea.sflag [#allocation3], 1
    %568 = vsyncpa %s567, 1

</llo_original>
